<compile_context>
chip_gen: v7x
topology: tpu7x:2x2x1
jax: 0.10.0
libtpu: 0.0.40
codegen_flags: <defaults>
</compile_context>

<pallas_src>
import functools

import jax
import jax.numpy as jnp
from jax import lax
from jax.experimental import pallas as pl
from jax.experimental.pallas import tpu as pltpu


def nca_perceive_kernel(x_ref, o_ref, *, H, W):
    # x_ref: (Ct, H*W) flattened channel tile of one batch; o_ref: (Ct, 3*H*W).
    HW = H * W
    x = x_ref[...]

    # Column index j = p % W for every flattened position p (>=2-D iota on TPU).
    col = lax.broadcasted_iota(jnp.int32, (1, HW), 1) % W
    first_col = col == 0
    last_col = col == (W - 1)

    # Circular neighbors on the flattened row-major spatial axis.
    def left(a):    # a[c, i, (j-1) mod W]
        return jnp.where(first_col, jnp.roll(a, 1 - W, axis=1), jnp.roll(a, 1, axis=1))

    def right(a):   # a[c, i, (j+1) mod W]
        return jnp.where(last_col, jnp.roll(a, W - 1, axis=1), jnp.roll(a, -1, axis=1))

    def up(a):      # a[c, (i-1) mod H, j]  (whole-row roll is exactly circular)
        return jnp.roll(a, W, axis=1)

    def down(a):    # a[c, (i+1) mod H, j]
        return jnp.roll(a, -W, axis=1)

    # sobel_x = [[-1,0,1],[-2,0,2],[-1,0,1]] / 8  (cross-correlation)
    dcol = right(x) - left(x)
    sob_x = (up(dcol) + 2.0 * dcol + down(dcol)) * 0.125
    # sobel_y = sobel_x.T = [[-1,-2,-1],[0,0,0],[1,2,1]] / 8
    drow = down(x) - up(x)
    sob_y = (left(drow) + 2.0 * drow + right(drow)) * 0.125

    # Per-group output order (eye, dx, dx.T); contiguous lane ranges so the
    # wrapper's free reshape reproduces the PyTorch g*3+k channel interleave.
    o_ref[:, 0:HW] = x
    o_ref[:, HW:2 * HW] = sob_x
    o_ref[:, 2 * HW:3 * HW] = sob_y


def nca_perceive(x, *, vmem_block_budget_bytes=24 * 1024 * 1024):
    B, C, H, W = x.shape
    assert C == 16, "NCAPerceive hard-codes groups=16"
    HW = H * W
    itemsize = jnp.dtype(x.dtype).itemsize

    # Largest channel tile whose double-buffered in (Ct,HW) + out (Ct,3*HW)
    # blocks fit the VMEM budget; floor 8 keeps the (8,128) block constraint.
    ct = C
    while ct > 8 and 2 * (ct * HW + ct * 3 * HW) * itemsize > vmem_block_budget_bytes:
        ct //= 2
    assert C % ct == 0
    # TODO(synk): for extreme grids where even a ct=8 channel tile overflows
    # VMEM (H*W >~ 200k at f32), add spatial tiling with a 1-pixel circular halo.
    needed = 2 * (ct * HW + ct * 3 * HW) * itemsize
    vmem_limit = max(32 * 1024 * 1024, (needed * 5) // 4)

    # Contiguous (layout-preserving, effectively free) reshape so the kernel's
    # trailing dim is lane-dense (HW instead of W).
    x_flat = x.reshape(B, C, HW)

    out_flat = pl.pallas_call(
        functools.partial(nca_perceive_kernel, H=H, W=W),
        out_shape=jax.ShapeDtypeStruct((B, C, 3 * HW), x.dtype),
        grid=(B, C // ct),
        in_specs=[pl.BlockSpec((None, ct, HW), lambda b, c: (b, c, 0))],
        out_specs=pl.BlockSpec((None, ct, 3 * HW), lambda b, c: (b, c, 0)),
        compiler_params=pltpu.CompilerParams(
            dimension_semantics=("parallel", "parallel"),
            vmem_limit_bytes=vmem_limit),
        cost_estimate=pl.CostEstimate(
            flops=20 * B * C * HW,
            transcendentals=0,
            bytes_accessed=4 * itemsize * B * C * HW),  # 1x in + 3x out
    )(x_flat)

    # (B, C, 3*H*W) -> (B, 3C, H, W): contiguous (free) reshape reproducing the
    # PyTorch g*3+k output-channel interleave exactly.
    return out_flat.reshape(B, 3 * C, H, W)


def _reference(x):
    # Pure-JAX reference mirroring the PyTorch module (grouped conv2d, circular pad).
    eye = jnp.array([[0.0, 0.0, 0.0], [0.0, 1.0, 0.0], [0.0, 0.0, 0.0]], x.dtype)
    dx = jnp.array([[-1.0, 0.0, 1.0], [-2.0, 0.0, 2.0], [-1.0, 0.0, 1.0]], x.dtype) / 8.0
    w = jnp.stack([eye, dx, dx.T])                                  # (3, 3, 3)
    w = jnp.tile(w[None], (16, 1, 1, 1)).reshape(48, 1, 3, 3)       # '(16 K) 1 H W'
    xp = jnp.pad(x, ((0, 0), (0, 0), (1, 1), (1, 1)), mode="wrap")  # circular pad
    return jax.lax.conv_general_dilated(
        xp, w, window_strides=(1, 1), padding="VALID",
        dimension_numbers=("NCHW", "OIHW", "NCHW"),
        feature_group_count=16)


if __name__ == "__main__":
    key = jax.random.PRNGKey(0)
    B, C, H, W = 2, 16, 16, 16          # module requires C == 16 (groups=16)
    x = jax.random.normal(key, (B, C, H, W), dtype=jnp.float32)

    out = nca_perceive(x)
    out = jax.block_until_ready(out)

    ref = _reference(x)
    assert out.shape == (B, 3 * C, H, W), out.shape
    assert jnp.allclose(out, ref, atol=1e-5, rtol=1e-5), float(jnp.abs(out - ref).max())

    print("KERNEL_OK")
</pallas_src>

<mosaic_0001>
module attributes {stable_mosaic.version = 11 : i64} {
  func.func @nca_perceive_kernel(%arg0: i32, %arg1: i32, %arg2: memref<1x16x256xf32, #tpu.memory_space<vmem>>, %arg3: memref<1x16x768xf32, #tpu.memory_space<vmem>>) attributes {dimension_semantics = [#tpu.dimension_semantics<parallel>, #tpu.dimension_semantics<parallel>], iteration_bounds = array<i64: 2, 1>, scalar_prefetch = 0 : i64, scratch_operands = 0 : i64, tpu.core_type = #tpu.core_type<tc>, window_params = [{transform_indices = @transform_0, window_bounds = array<i64: 1, 16, 256>}, {transform_indices = @transform_1, window_bounds = array<i64: 1, 16, 768>}]} {
    %c0 = arith.constant 0 : index
    %c0_0 = arith.constant 0 : index
    %c0_1 = arith.constant 0 : index
    %0 = vector.load %arg2[%c0, %c0_0, %c0_1] : memref<1x16x256xf32, #tpu.memory_space<vmem>>, vector<1x16x256xf32>
    %1 = vector.shape_cast %0 : vector<1x16x256xf32> to vector<16x256xf32>
    %2 = tpu.iota {dimensions = array<i32: 1>} : vector<1x256xi32>
    %c16_i32 = arith.constant 16 : i32
    %c0_i32 = arith.constant 0 : i32
    %3 = arith.cmpi eq, %c16_i32, %c0_i32 : i32
    %c1_i32 = arith.constant 1 : i32
    %4 = arith.select %3, %c1_i32, %c16_i32 : i32
    %5 = vector.broadcast %4 : i32 to vector<1x256xi32>
    %6 = arith.remsi %2, %5 : vector<1x256xi32>
    %c0_i32_2 = arith.constant 0 : i32
    %7 = vector.broadcast %c0_i32_2 : i32 to vector<1x256xi32>
    %8 = arith.cmpi ne, %6, %7 : vector<1x256xi32>
    %c0_i32_3 = arith.constant 0 : i32
    %9 = vector.broadcast %c0_i32_3 : i32 to vector<1x256xi32>
    %10 = arith.cmpi slt, %6, %9 : vector<1x256xi32>
    %c0_i32_4 = arith.constant 0 : i32
    %11 = arith.cmpi slt, %4, %c0_i32_4 : i32
    %12 = vector.broadcast %11 : i1 to vector<1x256xi1>
    %13 = vector.broadcast %12 : vector<1x256xi1> to vector<1x256xi1>
    %14 = arith.xori %10, %13 : vector<1x256xi1>
    %15 = arith.andi %14, %8 : vector<1x256xi1>
    %16 = vector.broadcast %4 : i32 to vector<1x256xi32>
    %17 = arith.addi %6, %16 : vector<1x256xi32>
    %18 = arith.select %15, %17, %6 : vector<1x256xi1>, vector<1x256xi32>
    %c0_i32_5 = arith.constant 0 : i32
    %19 = vector.broadcast %c0_i32_5 : i32 to vector<1x256xi32>
    %20 = arith.cmpi eq, %18, %19 : vector<1x256xi32>
    %c15_i32 = arith.constant 15 : i32
    %21 = vector.broadcast %c15_i32 : i32 to vector<1x256xi32>
    %22 = arith.cmpi eq, %18, %21 : vector<1x256xi32>
    %23 = vector.extract_strided_slice %1 {offsets = [0, 241], sizes = [16, 15], strides = [1, 1]} : vector<16x256xf32> to vector<16x15xf32>
    %24 = vector.extract_strided_slice %1 {offsets = [0, 0], sizes = [16, 241], strides = [1, 1]} : vector<16x256xf32> to vector<16x241xf32>
    %25 = tpu.concatenate %23, %24 in 1 : vector<16x15xf32>, vector<16x241xf32> -> vector<16x256xf32>
    %26 = vector.extract_strided_slice %1 {offsets = [0, 1], sizes = [16, 255], strides = [1, 1]} : vector<16x256xf32> to vector<16x255xf32>
    %27 = vector.extract_strided_slice %1 {offsets = [0, 0], sizes = [16, 1], strides = [1, 1]} : vector<16x256xf32> to vector<16x1xf32>
    %28 = tpu.concatenate %26, %27 in 1 : vector<16x255xf32>, vector<16x1xf32> -> vector<16x256xf32>
    %29 = vector.shape_cast %22 : vector<1x256xi1> to vector<1x256xi1>
    %30 = vector.broadcast %29 : vector<1x256xi1> to vector<16x256xi1>
    %31 = arith.select %30, %25, %28 : vector<16x256xi1>, vector<16x256xf32>
    %32 = vector.extract_strided_slice %1 {offsets = [0, 15], sizes = [16, 241], strides = [1, 1]} : vector<16x256xf32> to vector<16x241xf32>
    %33 = vector.extract_strided_slice %1 {offsets = [0, 0], sizes = [16, 15], strides = [1, 1]} : vector<16x256xf32> to vector<16x15xf32>
    %34 = tpu.concatenate %32, %33 in 1 : vector<16x241xf32>, vector<16x15xf32> -> vector<16x256xf32>
    %35 = vector.extract_strided_slice %1 {offsets = [0, 255], sizes = [16, 1], strides = [1, 1]} : vector<16x256xf32> to vector<16x1xf32>
    %36 = vector.extract_strided_slice %1 {offsets = [0, 0], sizes = [16, 255], strides = [1, 1]} : vector<16x256xf32> to vector<16x255xf32>
    %37 = tpu.concatenate %35, %36 in 1 : vector<16x1xf32>, vector<16x255xf32> -> vector<16x256xf32>
    %38 = vector.shape_cast %20 : vector<1x256xi1> to vector<1x256xi1>
    %39 = vector.broadcast %38 : vector<1x256xi1> to vector<16x256xi1>
    %40 = arith.select %39, %34, %37 : vector<16x256xi1>, vector<16x256xf32>
    %41 = arith.subf %31, %40 : vector<16x256xf32>
    %42 = vector.extract_strided_slice %41 {offsets = [0, 240], sizes = [16, 16], strides = [1, 1]} : vector<16x256xf32> to vector<16x16xf32>
    %43 = vector.extract_strided_slice %41 {offsets = [0, 0], sizes = [16, 240], strides = [1, 1]} : vector<16x256xf32> to vector<16x240xf32>
    %44 = tpu.concatenate %42, %43 in 1 : vector<16x16xf32>, vector<16x240xf32> -> vector<16x256xf32>
    %cst = arith.constant 2.000000e+00 : f32
    %45 = vector.broadcast %cst : f32 to vector<16x256xf32>
    %46 = arith.mulf %45, %41 : vector<16x256xf32>
    %47 = arith.addf %44, %46 : vector<16x256xf32>
    %48 = vector.extract_strided_slice %41 {offsets = [0, 16], sizes = [16, 240], strides = [1, 1]} : vector<16x256xf32> to vector<16x240xf32>
    %49 = vector.extract_strided_slice %41 {offsets = [0, 0], sizes = [16, 16], strides = [1, 1]} : vector<16x256xf32> to vector<16x16xf32>
    %50 = tpu.concatenate %48, %49 in 1 : vector<16x240xf32>, vector<16x16xf32> -> vector<16x256xf32>
    %51 = arith.addf %47, %50 : vector<16x256xf32>
    %cst_6 = arith.constant 1.250000e-01 : f32
    %52 = vector.broadcast %cst_6 : f32 to vector<16x256xf32>
    %53 = arith.mulf %51, %52 : vector<16x256xf32>
    %54 = vector.extract_strided_slice %1 {offsets = [0, 16], sizes = [16, 240], strides = [1, 1]} : vector<16x256xf32> to vector<16x240xf32>
    %55 = vector.extract_strided_slice %1 {offsets = [0, 0], sizes = [16, 16], strides = [1, 1]} : vector<16x256xf32> to vector<16x16xf32>
    %56 = tpu.concatenate %54, %55 in 1 : vector<16x240xf32>, vector<16x16xf32> -> vector<16x256xf32>
    %57 = vector.extract_strided_slice %1 {offsets = [0, 240], sizes = [16, 16], strides = [1, 1]} : vector<16x256xf32> to vector<16x16xf32>
    %58 = vector.extract_strided_slice %1 {offsets = [0, 0], sizes = [16, 240], strides = [1, 1]} : vector<16x256xf32> to vector<16x240xf32>
    %59 = tpu.concatenate %57, %58 in 1 : vector<16x16xf32>, vector<16x240xf32> -> vector<16x256xf32>
    %60 = arith.subf %56, %59 : vector<16x256xf32>
    %61 = vector.extract_strided_slice %60 {offsets = [0, 15], sizes = [16, 241], strides = [1, 1]} : vector<16x256xf32> to vector<16x241xf32>
    %62 = vector.extract_strided_slice %60 {offsets = [0, 0], sizes = [16, 15], strides = [1, 1]} : vector<16x256xf32> to vector<16x15xf32>
    %63 = tpu.concatenate %61, %62 in 1 : vector<16x241xf32>, vector<16x15xf32> -> vector<16x256xf32>
    %64 = vector.extract_strided_slice %60 {offsets = [0, 255], sizes = [16, 1], strides = [1, 1]} : vector<16x256xf32> to vector<16x1xf32>
    %65 = vector.extract_strided_slice %60 {offsets = [0, 0], sizes = [16, 255], strides = [1, 1]} : vector<16x256xf32> to vector<16x255xf32>
    %66 = tpu.concatenate %64, %65 in 1 : vector<16x1xf32>, vector<16x255xf32> -> vector<16x256xf32>
    %67 = vector.shape_cast %20 : vector<1x256xi1> to vector<1x256xi1>
    %68 = vector.broadcast %67 : vector<1x256xi1> to vector<16x256xi1>
    %69 = arith.select %68, %63, %66 : vector<16x256xi1>, vector<16x256xf32>
    %cst_7 = arith.constant 2.000000e+00 : f32
    %70 = vector.broadcast %cst_7 : f32 to vector<16x256xf32>
    %71 = arith.mulf %70, %60 : vector<16x256xf32>
    %72 = arith.addf %69, %71 : vector<16x256xf32>
    %73 = vector.extract_strided_slice %60 {offsets = [0, 241], sizes = [16, 15], strides = [1, 1]} : vector<16x256xf32> to vector<16x15xf32>
    %74 = vector.extract_strided_slice %60 {offsets = [0, 0], sizes = [16, 241], strides = [1, 1]} : vector<16x256xf32> to vector<16x241xf32>
    %75 = tpu.concatenate %73, %74 in 1 : vector<16x15xf32>, vector<16x241xf32> -> vector<16x256xf32>
    %76 = vector.extract_strided_slice %60 {offsets = [0, 1], sizes = [16, 255], strides = [1, 1]} : vector<16x256xf32> to vector<16x255xf32>
    %77 = vector.extract_strided_slice %60 {offsets = [0, 0], sizes = [16, 1], strides = [1, 1]} : vector<16x256xf32> to vector<16x1xf32>
    %78 = tpu.concatenate %76, %77 in 1 : vector<16x255xf32>, vector<16x1xf32> -> vector<16x256xf32>
    %79 = vector.shape_cast %22 : vector<1x256xi1> to vector<1x256xi1>
    %80 = vector.broadcast %79 : vector<1x256xi1> to vector<16x256xi1>
    %81 = arith.select %80, %75, %78 : vector<16x256xi1>, vector<16x256xf32>
    %82 = arith.addf %72, %81 : vector<16x256xf32>
    %cst_8 = arith.constant 1.250000e-01 : f32
    %83 = vector.broadcast %cst_8 : f32 to vector<16x256xf32>
    %84 = arith.mulf %82, %83 : vector<16x256xf32>
    %c0_9 = arith.constant 0 : index
    %c0_10 = arith.constant 0 : index
    %c0_11 = arith.constant 0 : index
    %85 = vector.load %arg3[%c0_9, %c0_10, %c0_11] : memref<1x16x768xf32, #tpu.memory_space<vmem>>, vector<1x16x256xf32>
    %86 = vector.shape_cast %85 : vector<1x16x256xf32> to vector<16x256xf32>
    %87 = vector.shape_cast %1 : vector<16x256xf32> to vector<1x16x256xf32>
    tpu.vector_store %arg3[%c0_9, %c0_10, %c0_11], %87 {strides = array<i32>} : memref<1x16x768xf32, #tpu.memory_space<vmem>>, vector<1x16x256xf32>,
    %c0_12 = arith.constant 0 : index
    %c0_13 = arith.constant 0 : index
    %c256 = arith.constant 256 : index
    %88 = vector.load %arg3[%c0_12, %c0_13, %c256] : memref<1x16x768xf32, #tpu.memory_space<vmem>>, vector<1x16x256xf32>
    %89 = vector.shape_cast %88 : vector<1x16x256xf32> to vector<16x256xf32>
    %90 = vector.shape_cast %53 : vector<16x256xf32> to vector<1x16x256xf32>
    tpu.vector_store %arg3[%c0_12, %c0_13, %c256], %90 {strides = array<i32>} : memref<1x16x768xf32, #tpu.memory_space<vmem>>, vector<1x16x256xf32>,
    %c0_14 = arith.constant 0 : index
    %c0_15 = arith.constant 0 : index
    %c512 = arith.constant 512 : index
    %91 = vector.load %arg3[%c0_14, %c0_15, %c512] : memref<1x16x768xf32, #tpu.memory_space<vmem>>, vector<1x16x256xf32>
    %92 = vector.shape_cast %91 : vector<1x16x256xf32> to vector<16x256xf32>
    %93 = vector.shape_cast %84 : vector<16x256xf32> to vector<1x16x256xf32>
    tpu.vector_store %arg3[%c0_14, %c0_15, %c512], %93 {strides = array<i32>} : memref<1x16x768xf32, #tpu.memory_space<vmem>>, vector<1x16x256xf32>,
    return
  }
  func.func @transform_0(%arg0: i32, %arg1: i32) -> (i32, i32, i32) {
    %c0_i32 = arith.constant 0 : i32
    %c0_i32_0 = arith.constant 0 : i32
    return %arg0, %arg1, %c0_i32 : i32, i32, i32
  }
  func.func @transform_1(%arg0: i32, %arg1: i32) -> (i32, i32, i32) {
    %c0_i32 = arith.constant 0 : i32
    %c0_i32_0 = arith.constant 0 : i32
    return %arg0, %arg1, %c0_i32 : i32, i32, i32
  }
}

</mosaic_0001>

<llo_original>
// kernel: tpu_custom_call.1
$region0: #{tpu_custom_call.1}
  #allocation0 [shape = 'u32[]', space=smem, size = 0x4, offset = 0x4, fixed_abs, tag = 'smem constant byte address 0x4 - core index']
  #allocation1 [shape = 'u32[144,128]{1,0:T(1,128)}', space=vmem, size = 0x12000, scoped, tag = 'internal scratch']
  %s0 = inlined_call_operand.hbm [shape: f32[2,16,256], index: 0, kind: input, shape index: {}]
  %s1 = inlined_call_operand.hbm [shape: f32[2,16,768], index: 1, kind: output, shape index: {}]
  %s2 = sld [smem:[#allocation0]]
  $region41: #{tpu_custom_call.1} parent=0
    _
  %s4 = ssub.s32 1, %s2
  %s5 = scalar_select 0, %s4, %s2
  $region1: #{tpu_custom_call.1} parent=0
    #allocation2 [shape = 'u8[32768]{0}', space=vmem, size = 0x8000, scoped, tag = 'input window, operand 0']
    #allocation3 [shape = 's32[2]{0}', space=sflag, size = 0x8, scoped, tag = 'scoped memory for tpu_custom_call.1']
    #allocation4 [shape = 's32[2]{0}', space=sflag, size = 0x8, scoped, tag = 'scoped memory for tpu_custom_call.1']
    #allocation5 [shape = 'u8[98304]{0}', space=vmem, size = 0x18000, scoped, tag = 'output window, operand 0']
    %6 = vsyncpa [#allocation3], 0
    %s7 = scalar_lea.sflag [#allocation3], 1
    %8 = vsyncpa %s7, 0
    %9 = vsyncpa [#allocation4], 0
    %s10 = scalar_lea.sflag [#allocation4], 1
    %11 = vsyncpa %s10, 0
    loop: start=0, step=1, limit=4
    $region2: #{tpu_custom_call.1} parent=1 // loop_pre_header
      _
    $region3: #{tpu_custom_call.1} parent=1 // loop_header
      %s13 = sphi 0, %s17
      %p14 = scmp.ge.s32.totalorder %s13, 4
      %s20 = sphi 0, %s32
      %s21 = sphi 0, %s28
      %s22 = sphi 0, %s20
      %s23 = sphi 0, %s21
      %s24 = sphi 0, %s22
      %s25 = sphi 0, %s23
      %s37 = sphi 0, %s39
      %s40 = sphi 0, %s37
      %s41 = sphi 0, %s40
      %s57 = sphi 0, %s41
      %s65 = sphi 0, %s67
      %s68 = sphi 0, %s65
      %s69 = sphi 0, %s68
      %s85 = sphi 0, %s69
    $region4: #{tpu_custom_call.1} parent=1 // loop_header_branch
      %16 = sbr.rel (%p14) target = $region8
    $region5: #{tpu_custom_call.1} parent=1 // loop_body
      %s18 = ssub.s32 %s13, 1
      %s19 = ssub.s32 %s13, 2
      %s26 = sadd.s32 1, %s21
      %p27 = scmp.ge.s32.totalorder %s26, 1
      %s28 = scalar_select %p27, 0, %s26
      %s29 = sadd.s32 1, %s20
      %s30 = scalar_select %p27, %s29, %s20
      %p31 = scmp.ge.s32.totalorder %s30, 2
      %s32 = scalar_select %p31, 0, %s30
      %s33 = ssub.s32 %s20, %s32
      %s34 = ssub.s32 %s21, %s28
      %s35 = sor.u32 %s33, %s34
      %p36 = scmp.eq.s32.totalorder %s35, 0
      %s38 = sadd.s32 %s37, 1
      %s39 = scalar_select %p36, %s37, %s38
      %p42 = pneg %p36
      %p43 = scmp.eq.s32.totalorder %s13, 1
      %p44 = por %p42, %p43
      %p45 = scmp.ne.s32.totalorder %s37, %s40
      %p46 = scmp.eq.s32.totalorder %s13, 0
      %p47 = por %p45, %p46
      %p48 = scmp.ne.s32.totalorder %s37, %s40
      %p49 = scmp.eq.s32.totalorder %s18, 1
      %p50 = por %p48, %p49
      %p51 = scmp.ne.s32.totalorder %s40, %s41
      %p52 = scmp.eq.s32.totalorder %s18, 0
      %p53 = por %p51, %p52
      %p54 = scmp.ne.s32.totalorder %s40, %s41
      %p55 = scmp.eq.s32.totalorder %s19, 1
      %p56 = por %p54, %p55
      %p58 = scmp.ne.s32.totalorder %s41, %s57
      %p59 = scmp.eq.s32.totalorder %s19, 0
      %p60 = por %p58, %p59
      %s61 = ssub.s32 %s20, %s32
      %s62 = ssub.s32 %s21, %s28
      %s63 = sor.u32 %s61, %s62
      %p64 = scmp.eq.s32.totalorder %s63, 0
      %s66 = sadd.s32 %s65, 1
      %s67 = scalar_select %p64, %s65, %s66
      %p70 = pneg %p64
      %p71 = scmp.eq.s32.totalorder %s13, 1
      %p72 = por %p70, %p71
      %p73 = scmp.ne.s32.totalorder %s65, %s68
      %p74 = scmp.eq.s32.totalorder %s13, 0
      %p75 = por %p73, %p74
      %p76 = scmp.ne.s32.totalorder %s65, %s68
      %p77 = scmp.eq.s32.totalorder %s18, 1
      %p78 = por %p76, %p77
      %p79 = scmp.ne.s32.totalorder %s68, %s69
      %p80 = scmp.eq.s32.totalorder %s18, 0
      %p81 = por %p79, %p80
      %p82 = scmp.ne.s32.totalorder %s68, %s69
      %p83 = scmp.eq.s32.totalorder %s19, 1
      %p84 = por %p82, %p83
      %p86 = scmp.ne.s32.totalorder %s69, %s85
      %p87 = scmp.eq.s32.totalorder %s19, 0
      %p88 = por %p86, %p87
      %p89 = scmp.le.s32.totalorder 1, %s13
      %p90 = scmp.lt.s32.totalorder %s13, 3
      %p91 = pnand %p89, %p90
      %p92 = pneg %p91
      // Predicated region
      $region9: #{tpu_custom_call.1} parent=5 // pred_check
        _
      $region10: #{tpu_custom_call.1} parent=5 // pred_check_branch
        %94 = sbr.rel (%p91) target = $region12
      $region11: #{tpu_custom_call.1} parent=5 // pred_region
        %s95 = ssub.s32 %s13, 1
      $region12: #{tpu_custom_call.1} parent=5 // pred_fallthru
        _
      %p96 = scmp.lt.s32.totalorder %s13, 2
      // Predicated region
      $region13: #{tpu_custom_call.1} parent=5 // pred_check
        %p97 = pneg %p96
      $region14: #{tpu_custom_call.1} parent=5 // pred_check_branch
        %99 = sbr.rel (%p97) target = $region16
      $region15: #{tpu_custom_call.1} parent=5 // pred_region
        // Predicated region
        $region17: #{tpu_custom_call.1} parent=15 // pred_check
          %p100 = pneg %p47
        $region18: #{tpu_custom_call.1} parent=15 // pred_check_branch
          %102 = sbr.rel (%p100) target = $region20
        $region19: #{tpu_custom_call.1} parent=15 // pred_region
          %s103 = sand.u32 %s37, 1
          %s104 = scalar_lea.sflag [#allocation3], %s103
          %s105 = sand.u32 %s37, 1
          %s106 = smul.addr %s105, 32
          %s107 = scalar_lea.vmem [#allocation2], %s106
          %s108 = smul.u32 2, %s21
          %s110 = ssub.s32 512, 512
          %111 = vsyncadd %s104, %s110
          %s112 = smul.addr %s108, 2
          %s113 = smul.addr %s20, 4
          %s114 = sadd.s32 %s112, %s113
          %s115 = smul.addr %s114, 128
          %s116 = scalar_lea.hbm %s0, %s115
          %s117 = sshll.u32 %s107, 4
          %s118 = int_to_ptr.vmem [resolvable:$true] %s117
          %123 = dma.hbm_to_vmem [thread:$0]  %s116, 512, %s118, %s104, 256, 256, 16
        $region20: #{tpu_custom_call.1} parent=15 // pred_fallthru
          _
      $region16: #{tpu_custom_call.1} parent=5 // pred_fallthru
        _
      %p124 = scmp.le.s32.totalorder 1, %s13
      %p125 = scmp.lt.s32.totalorder %s13, 3
      %p126 = pnand %p124, %p125
      %p127 = pneg %p126
      // Predicated region
      $region21: #{tpu_custom_call.1} parent=5 // pred_check
        _
      $region22: #{tpu_custom_call.1} parent=5 // pred_check_branch
        %129 = sbr.rel (%p126) target = $region24
      $region23: #{tpu_custom_call.1} parent=5 // pred_region
        %s130 = ssub.s32 %s13, 1
        %s131 = sand.u32 %s40, 1
        %s132 = scalar_lea.sflag [#allocation3], %s131
        %s133 = sand.u32 %s40, 1
        %s134 = smul.addr %s133, 32
        %s135 = scalar_lea.vmem [#allocation2], %s134
        // Predicated region
        $region25: #{tpu_custom_call.1} parent=23 // pred_check
          %p136 = pneg %p53
        $region26: #{tpu_custom_call.1} parent=23 // pred_check_branch
          %138 = sbr.rel (%p136) target = $region28
        $region27: #{tpu_custom_call.1} parent=23 // pred_region
          %139 = dma.done %s132, 512
        $region28: #{tpu_custom_call.1} parent=23 // pred_fallthru
          _
        %s140 = sand.u32 %s40, 1
        %s141 = scalar_lea.sflag [#allocation3], %s140
        %s142 = sand.u32 %s40, 1
        %s143 = smul.addr %s142, 32
        %s144 = scalar_lea.vmem [#allocation2], %s143
        %p145 = pneg %p53
        %p146 = pneg %p50
        %p147 = pneg %p81
        %p148 = pneg %p78
        %s149 = sand.u32 %s68, 1
        %s150 = scalar_lea.sflag [#allocation4], %s149
        %s151 = sand.u32 %s68, 1
        %s152 = smul.addr %s151, 96
        %s153 = scalar_lea.vmem [#allocation5], %s152
        %s154 = smul.u32 2, %s23
        %s155 = smul.u32 2, %s23
        %v156 = vld [vmem:[%s135] sm:$0xff]
        %v157 = vld [vmem:[%s135 + $0x8] sm:$0xff]
        %v158 = vld [vmem:[%s135 + $0x10] sm:$0xff]
        %v159 = vld [vmem:[%s135 + $0x18] sm:$0xff]
        %v160 = vlaneseq
        %v161 = vand.u32 %v160, 127
        %v162 = vadd.s32 %v161, 128
        %vm163 = vcmp.lt.s32.totalorder %v161, 0
        %v164 = vsub.s32 0, %v161
        %v165 = vsel %vm163, %v164, %v161
        %v166 = vshrl.u32 %v165, 4
        %v167 = vand.u32 %v165, 15
        %v168 = vsub.s32 0, %v167
        %v169 = vsel %vm163, %v168, %v167
        %vm170 = vcmp.lt.s32.totalorder %v162, 0
        %v171 = vsub.s32 0, %v162
        %v172 = vsel %vm170, %v171, %v162
        %v173 = vshrl.u32 %v172, 4
        %v174 = vand.u32 %v172, 15
        %v175 = vsub.s32 0, %v174
        %v176 = vsel %vm170, %v175, %v174
        %vm177 = vcmp.ne.s32.totalorder %v169, 0
        %vm178 = vcmp.ne.s32.totalorder %v176, 0
        %vm179 = vcmp.lt.s32.totalorder %v169, 0
        %vm180 = vcmp.lt.s32.totalorder %v176, 0
        %vm181 = vmand %vm179, %vm177
        %vm182 = vmand %vm180, %vm178
        %v183 = vadd.s32 %v169, 16
        %v184 = vadd.s32 %v176, 16
        %v185 = vsel %vm181, %v183, %v169
        %v186 = vsel %vm182, %v184, %v176
        %vm187 = vcmp.eq.s32.totalorder %v185, 0
        %vm188 = vcmp.eq.s32.totalorder %v186, 0
        %vm189 = vcmp.eq.s32.totalorder %v185, 15
        %vm190 = vcmp.eq.s32.totalorder %v186, 15
        %193 = vrot.lane.b32.xlu0 %v157, 15
        %v194 = vpop.permute.xlu0 %193
        %195 = vrot.lane.b32.xlu0 %v159, 15
        %v196 = vpop.permute.xlu0 %195
        %201 = vrot.lane.b32.xlu0 %v156, 15
        %v202 = vpop.permute.xlu0 %201
        %203 = vrot.lane.b32.xlu0 %v158, 15
        %v204 = vpop.permute.xlu0 %203
        %vm205 = vcmask 121856
        %v206 = vsel %vm205, %v202, %v194
        %v207 = vsel %vm205, %v204, %v196
        %v212 = vsel %vm205, %v194, %v202
        %v213 = vsel %vm205, %v196, %v204
        %214 = vrot.lane.b32.xlu0 %v156, 127
        %v215 = vpop.permute.xlu0 %214
        %216 = vrot.lane.b32.xlu0 %v157, 127
        %v217 = vpop.permute.xlu0 %216
        %218 = vrot.lane.b32.xlu0 %v158, 127
        %v219 = vpop.permute.xlu0 %218
        %220 = vrot.lane.b32.xlu0 %v159, 127
        %v221 = vpop.permute.xlu0 %220
        %vm222 = vcmask 1039360
        %v223 = vsel %vm222, %v215, %v217
        %v224 = vsel %vm222, %v219, %v221
        %v231 = vsel %vm222, %v217, %v215
        %v232 = vsel %vm222, %v221, %v219
        %v233 = vsel %vm189, 1, 0
        %v234 = vsel %vm190, 1, 0
        %vm235 = vcmp.eq.s32.totalorder %v233, 1
        %vm236 = vcmp.eq.s32.totalorder %v234, 1
        %v237 = vsel %vm235, %v212, %v223
        %v238 = vsel %vm236, %v206, %v231
        %v239 = vsel %vm235, %v213, %v224
        %v240 = vsel %vm236, %v207, %v232
        %241 = vrot.lane.b32.xlu0 %v156, 113
        %v242 = vpop.permute.xlu0 %241
        %243 = vrot.lane.b32.xlu0 %v157, 113
        %v244 = vpop.permute.xlu0 %243
        %245 = vrot.lane.b32.xlu0 %v158, 113
        %v246 = vpop.permute.xlu0 %245
        %247 = vrot.lane.b32.xlu0 %v159, 113
        %v248 = vpop.permute.xlu0 %247
        %vm249 = vcmask 924672
        %v250 = vsel %vm249, %v242, %v244
        %v251 = vsel %vm249, %v246, %v248
        %v258 = vsel %vm249, %v244, %v242
        %v259 = vsel %vm249, %v248, %v246
        %260 = vrot.lane.b32.xlu0 %v157, 1
        %v261 = vpop.permute.xlu0 %260
        %262 = vrot.lane.b32.xlu0 %v159, 1
        %v263 = vpop.permute.xlu0 %262
        %266 = vrot.lane.b32.xlu0 %v156, 1
        %v267 = vpop.permute.xlu0 %266
        %268 = vrot.lane.b32.xlu0 %v158, 1
        %v269 = vpop.permute.xlu0 %268
        %vm270 = vcmask 7168
        %v271 = vsel %vm270, %v267, %v261
        %v272 = vsel %vm270, %v269, %v263
        %v277 = vsel %vm270, %v261, %v267
        %v278 = vsel %vm270, %v263, %v269
        %v279 = vsel %vm187, 1, 0
        %v280 = vsel %vm188, 1, 0
        %vm281 = vcmp.eq.s32.totalorder %v279, 1
        %vm282 = vcmp.eq.s32.totalorder %v280, 1
        %v283 = vsel %vm281, %v250, %v277
        %v284 = vsel %vm282, %v258, %v271
        %v285 = vsel %vm281, %v251, %v278
        %v286 = vsel %vm282, %v259, %v272
        %v287 = vsub.f32 %v237, %v283
        %v288 = vsub.f32 %v238, %v284
        %v289 = vsub.f32 %v239, %v285
        %v290 = vsub.f32 %v240, %v286
        %293 = vrot.lane.b32.xlu0 %v288, 16
        %v294 = vpop.permute.xlu0 %293
        %295 = vrot.lane.b32.xlu0 %v290, 16
        %v296 = vpop.permute.xlu0 %295
        %301 = vrot.lane.b32.xlu0 %v287, 16
        %v302 = vpop.permute.xlu0 %301
        %303 = vrot.lane.b32.xlu0 %v289, 16
        %v304 = vpop.permute.xlu0 %303
        %vm305 = vcmask 130048
        %v306 = vsel %vm305, %v302, %v294
        %v307 = vsel %vm305, %v304, %v296
        %v312 = vsel %vm305, %v294, %v302
        %v313 = vsel %vm305, %v296, %v304
        %v314 = vmul.f32 %v287, 2.0
        %v315 = vmul.f32 %v288, 2.0
        %v316 = vmul.f32 %v289, 2.0
        %v317 = vmul.f32 %v290, 2.0
        %v318 = vadd.f32 %v312, %v314
        %v319 = vadd.f32 %v306, %v315
        %v320 = vadd.f32 %v313, %v316
        %v321 = vadd.f32 %v307, %v317
        %322 = vrot.lane.b32.xlu0 %v287, 112
        %v323 = vpop.permute.xlu0 %322
        %324 = vrot.lane.b32.xlu0 %v288, 112
        %v325 = vpop.permute.xlu0 %324
        %326 = vrot.lane.b32.xlu0 %v289, 112
        %v327 = vpop.permute.xlu0 %326
        %328 = vrot.lane.b32.xlu0 %v290, 112
        %v329 = vpop.permute.xlu0 %328
        %vm330 = vcmask 916480
        %v331 = vsel %vm330, %v323, %v325
        %v332 = vsel %vm330, %v327, %v329
        %v339 = vsel %vm330, %v325, %v323
        %v340 = vsel %vm330, %v329, %v327
        %v341 = vadd.f32 %v318, %v331
        %v342 = vadd.f32 %v319, %v339
        %v343 = vadd.f32 %v320, %v332
        %v344 = vadd.f32 %v321, %v340
        %v345 = vmul.f32 %v341, 0.125
        %v346 = vmul.f32 %v342, 0.125
        %v347 = vmul.f32 %v343, 0.125
        %v348 = vmul.f32 %v344, 0.125
        %349 = vrot.lane.b32.xlu0 %v156, 112
        %v350 = vpop.permute.xlu0 %349
        %351 = vrot.lane.b32.xlu0 %v157, 112
        %v352 = vpop.permute.xlu0 %351
        %353 = vrot.lane.b32.xlu0 %v158, 112
        %v354 = vpop.permute.xlu0 %353
        %355 = vrot.lane.b32.xlu0 %v159, 112
        %v356 = vpop.permute.xlu0 %355
        %v357 = vsel %vm330, %v350, %v352
        %v358 = vsel %vm330, %v354, %v356
        %v365 = vsel %vm330, %v352, %v350
        %v366 = vsel %vm330, %v356, %v354
        %367 = vrot.lane.b32.xlu0 %v157, 16
        %v368 = vpop.permute.xlu0 %367
        %369 = vrot.lane.b32.xlu0 %v159, 16
        %v370 = vpop.permute.xlu0 %369
        %373 = vrot.lane.b32.xlu0 %v156, 16
        %v374 = vpop.permute.xlu0 %373
        %375 = vrot.lane.b32.xlu0 %v158, 16
        %v376 = vpop.permute.xlu0 %375
        %v377 = vsel %vm305, %v374, %v368
        %v378 = vsel %vm305, %v376, %v370
        %v383 = vsel %vm305, %v368, %v374
        %v384 = vsel %vm305, %v370, %v376
        %v385 = vsub.f32 %v357, %v383
        %v386 = vsub.f32 %v365, %v377
        %v387 = vsub.f32 %v358, %v384
        %v388 = vsub.f32 %v366, %v378
        %393 = vrot.lane.b32.xlu0 %v385, 113
        %v394 = vpop.permute.xlu0 %393
        %395 = vrot.lane.b32.xlu0 %v386, 113
        %v396 = vpop.permute.xlu0 %395
        %397 = vrot.lane.b32.xlu0 %v387, 113
        %v398 = vpop.permute.xlu0 %397
        %399 = vrot.lane.b32.xlu0 %v388, 113
        %v400 = vpop.permute.xlu0 %399
        %v401 = vsel %vm249, %v394, %v396
        %v402 = vsel %vm249, %v398, %v400
        %v409 = vsel %vm249, %v396, %v394
        %v410 = vsel %vm249, %v400, %v398
        %411 = vrot.lane.b32.xlu0 %v386, 1
        %v412 = vpop.permute.xlu0 %411
        %413 = vrot.lane.b32.xlu0 %v388, 1
        %v414 = vpop.permute.xlu0 %413
        %417 = vrot.lane.b32.xlu0 %v385, 1
        %v418 = vpop.permute.xlu0 %417
        %419 = vrot.lane.b32.xlu0 %v387, 1
        %v420 = vpop.permute.xlu0 %419
        %v421 = vsel %vm270, %v418, %v412
        %v422 = vsel %vm270, %v420, %v414
        %v427 = vsel %vm270, %v412, %v418
        %v428 = vsel %vm270, %v414, %v420
        %v429 = vsel %vm281, %v401, %v427
        %v430 = vsel %vm282, %v409, %v421
        %v431 = vsel %vm281, %v402, %v428
        %v432 = vsel %vm282, %v410, %v422
        %v433 = vmul.f32 %v385, 2.0
        %v434 = vmul.f32 %v386, 2.0
        %v435 = vmul.f32 %v387, 2.0
        %v436 = vmul.f32 %v388, 2.0
        %v437 = vadd.f32 %v429, %v433
        %v438 = vadd.f32 %v430, %v434
        %v439 = vadd.f32 %v431, %v435
        %v440 = vadd.f32 %v432, %v436
        %441 = vrot.lane.b32.xlu0 %v386, 15
        %v442 = vpop.permute.xlu0 %441
        %443 = vrot.lane.b32.xlu0 %v388, 15
        %v444 = vpop.permute.xlu0 %443
        %447 = vrot.lane.b32.xlu0 %v385, 15
        %v448 = vpop.permute.xlu0 %447
        %449 = vrot.lane.b32.xlu0 %v387, 15
        %v450 = vpop.permute.xlu0 %449
        %v451 = vsel %vm205, %v448, %v442
        %v452 = vsel %vm205, %v450, %v444
        %v457 = vsel %vm205, %v442, %v448
        %v458 = vsel %vm205, %v444, %v450
        %459 = vrot.lane.b32.xlu0 %v385, 127
        %v460 = vpop.permute.xlu0 %459
        %461 = vrot.lane.b32.xlu0 %v386, 127
        %v462 = vpop.permute.xlu0 %461
        %463 = vrot.lane.b32.xlu0 %v387, 127
        %v464 = vpop.permute.xlu0 %463
        %465 = vrot.lane.b32.xlu0 %v388, 127
        %v466 = vpop.permute.xlu0 %465
        %v467 = vsel %vm222, %v460, %v462
        %v468 = vsel %vm222, %v464, %v466
        %v475 = vsel %vm222, %v462, %v460
        %v476 = vsel %vm222, %v466, %v464
        %v477 = vsel %vm235, %v457, %v467
        %v478 = vsel %vm236, %v451, %v475
        %v479 = vsel %vm235, %v458, %v468
        %v480 = vsel %vm236, %v452, %v476
        %v481 = vadd.f32 %v437, %v477
        %v482 = vadd.f32 %v438, %v478
        %v483 = vadd.f32 %v439, %v479
        %v484 = vadd.f32 %v440, %v480
        %v485 = vmul.f32 %v481, 0.125
        %v486 = vmul.f32 %v482, 0.125
        %v487 = vmul.f32 %v483, 0.125
        %v488 = vmul.f32 %v484, 0.125
        %489 = vst [vmem:[%s153] sm:$0xff] %v156
        %490 = vst [vmem:[%s153 + $0x8] sm:$0xff] %v157
        %491 = vst [vmem:[%s153 + $0x30] sm:$0xff] %v158
        %492 = vst [vmem:[%s153 + $0x38] sm:$0xff] %v159
        %493 = vst [vmem:[%s153 + $0x10] sm:$0xff] %v345
        %494 = vst [vmem:[%s153 + $0x18] sm:$0xff] %v346
        %495 = vst [vmem:[%s153 + $0x40] sm:$0xff] %v347
        %496 = vst [vmem:[%s153 + $0x48] sm:$0xff] %v348
        %497 = vst [vmem:[%s153 + $0x20] sm:$0xff] %v485
        %498 = vst [vmem:[%s153 + $0x28] sm:$0xff] %v486
        %499 = vst [vmem:[%s153 + $0x50] sm:$0xff] %v487
        %500 = vst [vmem:[%s153 + $0x58] sm:$0xff] %v488
        %s501 = sand.u32 %s68, 1
        %s502 = scalar_lea.sflag [#allocation4], %s501
        %s503 = sand.u32 %s68, 1
        %s504 = smul.addr %s503, 96
        %s505 = scalar_lea.vmem [#allocation5], %s504
        // Predicated region
        $region29: #{tpu_custom_call.1} parent=23 // pred_check
          %p506 = pneg %p78
        $region30: #{tpu_custom_call.1} parent=23 // pred_check_branch
          %508 = sbr.rel (%p506) target = $region32
        $region31: #{tpu_custom_call.1} parent=23 // pred_region
          %s509 = smul.u32 2, %s23
          %s511 = ssub.s32 1536, 1536
          %512 = vsyncadd %s502, %s511
          %s513 = smul.addr %s509, 6
          %s514 = smul.addr %s22, 12
          %s515 = sadd.s32 %s513, %s514
          %s516 = smul.addr %s515, 128
          %s517 = scalar_lea.hbm %s1, %s516
          %s518 = sshll.u32 %s505, 4
          %s519 = int_to_ptr.vmem [resolvable:$true] %s518
          %524 = dma.vmem_to_hbm [thread:$0]  %s519, 1536, %s517, %s502, 768, 768, 48
        $region32: #{tpu_custom_call.1} parent=23 // pred_fallthru
          _
      $region24: #{tpu_custom_call.1} parent=5 // pred_fallthru
        _
      %p525 = scmp.le.s32.totalorder 2, %s13
      // Predicated region
      $region33: #{tpu_custom_call.1} parent=5 // pred_check
        %p526 = pneg %p525
      $region34: #{tpu_custom_call.1} parent=5 // pred_check_branch
        %528 = sbr.rel (%p526) target = $region36
      $region35: #{tpu_custom_call.1} parent=5 // pred_region
        %s529 = ssub.s32 %s13, 2
        // Predicated region
        $region37: #{tpu_custom_call.1} parent=35 // pred_check
          %p530 = pneg %p84
        $region38: #{tpu_custom_call.1} parent=35 // pred_check_branch
          %532 = sbr.rel (%p530) target = $region40
        $region39: #{tpu_custom_call.1} parent=35 // pred_region
          %s533 = sand.u32 %s69, 1
          %s534 = scalar_lea.sflag [#allocation4], %s533
          %s535 = sand.u32 %s69, 1
          %s536 = smul.addr %s535, 96
          %s537 = scalar_lea.vmem [#allocation5], %s536
          %538 = dma.done %s534, 1536
        $region40: #{tpu_custom_call.1} parent=35 // pred_fallthru
          _
      $region36: #{tpu_custom_call.1} parent=5 // pred_fallthru
        _
    $region6: #{tpu_custom_call.1} parent=1 // loop_footer
      %s17 = sadd.s32 1, %s13
    $region7: #{tpu_custom_call.1} parent=1 // loop_footer_branch
      %12 = sbr.rel target = $region3
    $region8: #{tpu_custom_call.1} parent=1 // loop_exit
      _
    %539 = vsyncpa [#allocation3], 1
    %s540 = scalar_lea.sflag [#allocation3], 1
    %541 = vsyncpa %s540, 1
    %542 = vsyncpa [#allocation4], 1
    %s543 = scalar_lea.sflag [#allocation4], 1
    %544 = vsyncpa %s543, 1

</llo_original>
